<compile_context>
chip_gen: v6e
topology: v6e:2x2x1
jax: 0.10.0
libtpu: 0.0.40
codegen_flags: <defaults>
</compile_context>

<pallas_src>
import functools

import jax
import jax.numpy as jnp
from jax.experimental import pallas as pl
from jax.experimental.pallas import tpu as pltpu


def _round_up(x, m):
    return ((x + m - 1) // m) * m


def _cdiv(a, b):
    return (a + b - 1) // b


# ---------------------------------------------------------------------------
# Kernels
# ---------------------------------------------------------------------------

def _stable_sigmoid(x, e):
    # e = exp(-|x|); sigmoid = 1/(1+e) for x>=0, e/(1+e) for x<0.
    inv = pl.reciprocal(1.0 + e, approx=True)
    return jnp.where(x >= 0.0, inv, e * inv)


def _stable_softplus(x, e):
    # e = exp(-|x|); softplus = max(x, 0) + log(1 + e).
    return jnp.maximum(x, 0.0) + jnp.log(1.0 + e)


def _decoder_kernel_fused(z_ref, w1_ref, b1_ref, w2_ref, b2_ref, out_ref, *, x_dim):
    # Hidden layer: Linear + ReLU (MXU matmul, f32 accumulate; bias/ReLU in f32).
    h = jnp.dot(z_ref[...], w1_ref[...], preferred_element_type=jnp.float32)
    h = jnp.maximum(h + b1_ref[...], 0.0)

    # Single fused output projection over the full (padded) 2*x_dim width.
    x = jnp.dot(h.astype(w2_ref.dtype), w2_ref[...],
                preferred_element_type=jnp.float32) + b2_ref[...]

    # Shared exp(-|x|): one EUP exp per element feeds both activations; the
    # lane mask selects sigmoid (means lanes) vs softplus (vars lanes).
    e = jnp.exp(-jnp.abs(x))
    sig = _stable_sigmoid(x, e)
    sp = _stable_softplus(x, e)
    lane = jax.lax.broadcasted_iota(jnp.int32, x.shape, dimension=1)
    out_ref[...] = jnp.where(lane < x_dim, sig, sp).astype(out_ref.dtype)


def _decoder_kernel_split(z_ref, w1_ref, b1_ref, w2_ref, b2_ref,
                          means_ref, vars_ref, *, x_dim):
    # Used when x_dim is a multiple of 128: slice at a 128-lane boundary and
    # apply each activation only to its own half (no lane-mask select).
    h = jnp.dot(z_ref[...], w1_ref[...], preferred_element_type=jnp.float32)
    h = jnp.maximum(h + b1_ref[...], 0.0)
    x = jnp.dot(h.astype(w2_ref.dtype), w2_ref[...],
                preferred_element_type=jnp.float32) + b2_ref[...]

    xm = x[:, :x_dim]
    em = jnp.exp(-jnp.abs(xm))
    means_ref[...] = _stable_sigmoid(xm, em).astype(means_ref.dtype)

    xv = x[:, x_dim:]
    ev = jnp.exp(-jnp.abs(xv))
    vars_ref[...] = _stable_softplus(xv, ev).astype(vars_ref.dtype)


# ---------------------------------------------------------------------------
# Wrappers
# ---------------------------------------------------------------------------

def prepare_decoder_params(w1, b1, w2, b2, *, compute_dtype=jnp.float32):
    """One-time weight preparation (hoisted out of the per-call path).

    w1: (z_dim, H); b1: (H,); w2: (H, 2*x_dim); b2: (2*x_dim,) -- (in, out)
    layout, i.e. the transpose of PyTorch nn.Linear's (out, in) weight.
    Only the hidden / output feature dims are padded to 128 lanes; z_dim is
    left untouched so the per-call z DMA carries no pad bytes.
    """
    _, H = w1.shape
    N = w2.shape[1]
    Hp = _round_up(H, 128)
    Np = _round_up(N, 128)
    f32 = jnp.float32
    w1p = jnp.pad(w1.astype(f32), ((0, 0), (0, Hp - H))).astype(compute_dtype)
    w2p = jnp.pad(w2.astype(f32), ((0, Hp - H), (0, Np - N))).astype(compute_dtype)
    b1p = jnp.pad(b1.astype(f32), (0, Hp - H)).reshape(1, Hp)
    b2p = jnp.pad(b2.astype(f32), (0, Np - N)).reshape(1, Np)
    return w1p, b1p, w2p, b2p


@functools.partial(jax.jit,
                   static_argnames=("x_dim", "block_b", "out_dtype", "hidden_dim"))
def decoder_forward_prepared(z, params, *, x_dim, block_b=1024,
                             out_dtype=jnp.float32, hidden_dim=None):
    """z: (B, z_dim); params: output of prepare_decoder_params.

    Returns (means, vars), each (B, x_dim) in out_dtype.
    """
    w1p, b1p, w2p, b2p = params
    B, z_dim = z.shape
    assert w1p.shape[0] == z_dim
    Hp = w1p.shape[1]
    Np = w2p.shape[1]
    N = 2 * x_dim
    compute_dtype = w1p.dtype
    out_dtype = jnp.dtype(out_dtype)
    H_real = hidden_dim if hidden_dim is not None else Hp

    # Batch tiling: balanced tiles, rounded to the sublane packing of the
    # narrowest dtype in flight (bf16 packs 16 rows per vreg).
    align = 16 if (compute_dtype == jnp.bfloat16 or out_dtype == jnp.bfloat16) else 8
    n_tiles = max(_cdiv(B, block_b), 1)
    # v7x: 2 TensorCores share the "parallel" batch axis; give them >= 2 tiles
    # once the batch is big enough for the split to be worthwhile.
    if n_tiles == 1 and B >= 512:
        n_tiles = 2
    TB = _round_up(_cdiv(B, n_tiles), align)
    Bp = TB * n_tiles

    zc = z.astype(compute_dtype)
    if Bp != B:
        zc = jnp.pad(zc, ((0, Bp - B), (0, 0)))

    split = (x_dim % 128 == 0)  # then Np == 2 * x_dim exactly

    isz = jnp.dtype(compute_dtype).itemsize
    osz = out_dtype.itemsize
    out_tile_bytes = (2 * TB * x_dim * osz) if split else (TB * Np * osz)
    vmem_est = (2 * TB * z_dim * isz                # z tile (double-buffered)
                + 2 * out_tile_bytes                # out tile(s) (double-buffered)
                + 2 * (z_dim * Hp + Hp * Np) * isz  # resident weights (pipeline bufs)
                + 2 * (Hp + Np) * 4                 # biases
                + TB * Hp * 4 + 4 * TB * Np * 4)    # h / x / activation temps
    vmem_limit = int(min(max(2 * vmem_est, 16 * 1024 * 1024), 40 * 1024 * 1024))
    # TODO(synk): if the resident weights alone approach this limit (very large
    # hidden_dim / x_dim), add an Np grid axis tiling w2/out instead of relying
    # on whole-weight residency, so the kernel also fits v7x's 64 MiB VMEM.

    # Cost estimate on REAL (unpadded) dims.
    cost = pl.CostEstimate(
        flops=2 * B * (z_dim * H_real + H_real * N),
        transcendentals=2 * B * N,  # one exp + one log per output element
        bytes_accessed=(B * z_dim * isz
                        + (z_dim * Hp + Hp * Np) * isz
                        + (Hp + Np) * 4
                        + B * N * osz),
    )

    in_specs = [
        pl.BlockSpec((TB, z_dim), lambda i: (i, 0)),  # z: per-tile, no lane pad
        pl.BlockSpec((z_dim, Hp), lambda i: (0, 0)),  # w1: resident
        pl.BlockSpec((1, Hp), lambda i: (0, 0)),      # b1: resident
        pl.BlockSpec((Hp, Np), lambda i: (0, 0)),     # w2: resident
        pl.BlockSpec((1, Np), lambda i: (0, 0)),      # b2: resident
    ]
    compiler_params = pltpu.CompilerParams(
        dimension_semantics=("parallel",),
        vmem_limit_bytes=vmem_limit,
    )

    if split:
        means, vars_ = pl.pallas_call(
            functools.partial(_decoder_kernel_split, x_dim=x_dim),
            out_shape=(jax.ShapeDtypeStruct((Bp, x_dim), out_dtype),
                       jax.ShapeDtypeStruct((Bp, x_dim), out_dtype)),
            grid_spec=pltpu.PrefetchScalarGridSpec(
                num_scalar_prefetch=0,
                grid=(n_tiles,),
                in_specs=in_specs,
                out_specs=(pl.BlockSpec((TB, x_dim), lambda i: (i, 0)),
                           pl.BlockSpec((TB, x_dim), lambda i: (i, 0))),
            ),
            compiler_params=compiler_params,
            cost_estimate=cost,
        )(zc, w1p, b1p, w2p, b2p)
        if Bp != B:
            means, vars_ = means[:B], vars_[:B]
        return means, vars_

    out = pl.pallas_call(
        functools.partial(_decoder_kernel_fused, x_dim=x_dim),
        out_shape=jax.ShapeDtypeStruct((Bp, Np), out_dtype),
        grid_spec=pltpu.PrefetchScalarGridSpec(
            num_scalar_prefetch=0,
            grid=(n_tiles,),
            in_specs=in_specs,
            out_specs=pl.BlockSpec((TB, Np), lambda i: (i, 0)),
        ),
        compiler_params=compiler_params,
        cost_estimate=cost,
    )(zc, w1p, b1p, w2p, b2p)
    means = out[:B, :x_dim]
    vars_ = out[:B, x_dim:N]
    return means, vars_


def decoder_forward(z, w1, b1, w2, b2, x_dim, *, compute_dtype=jnp.float32,
                    block_b=1024, out_dtype=jnp.float32):
    """One-shot convenience wrapper. For repeated calls (sampling loops) call
    prepare_decoder_params once and reuse decoder_forward_prepared."""
    params = prepare_decoder_params(w1, b1, w2, b2, compute_dtype=compute_dtype)
    return decoder_forward_prepared(z, params, x_dim=x_dim, block_b=block_b,
                                    out_dtype=out_dtype, hidden_dim=w1.shape[1])


def _reference_forward(z, w1, b1, w2, b2, x_dim):
    h = jnp.maximum(z @ w1 + b1, 0.0)
    x = h @ w2 + b2
    return jax.nn.sigmoid(x[:, :x_dim]), jax.nn.softplus(x[:, x_dim:])


if __name__ == "__main__":
    # Small shapes consistent with the module's forward.
    B, z_dim, hidden_dim, x_dim = 8, 8, 32, 16

    key = jax.random.PRNGKey(0)
    (k_z, k_w1, k_b1, k_w2, k_b2, k_z2,
     k_w3, k_b3, k_w4, k_b4, k_z3) = jax.random.split(key, 11)

    z = jax.random.normal(k_z, (B, z_dim), dtype=jnp.float32)
    # Parameters stored as (in, out), i.e. the transpose of PyTorch's (out, in).
    w1 = jax.random.normal(k_w1, (z_dim, hidden_dim), dtype=jnp.float32) * 0.1
    b1 = jax.random.normal(k_b1, (hidden_dim,), dtype=jnp.float32) * 0.1
    w2 = jax.random.normal(k_w2, (hidden_dim, 2 * x_dim), dtype=jnp.float32) * 0.1
    b2 = jax.random.normal(k_b2, (2 * x_dim,), dtype=jnp.float32) * 0.1

    # --- f32 MXU path, fused epilogue (x_dim=16 < 128) ----------------------
    params_f32 = prepare_decoder_params(w1, b1, w2, b2)
    means, vars_ = decoder_forward_prepared(z, params_f32, x_dim=x_dim,
                                            hidden_dim=hidden_dim)
    jax.block_until_ready((means, vars_))
    ref_means, ref_vars = _reference_forward(z, w1, b1, w2, b2, x_dim)
    assert means.shape == (B, x_dim) and vars_.shape == (B, x_dim)
    assert jnp.allclose(means, ref_means, atol=2e-3, rtol=2e-3)
    assert jnp.allclose(vars_, ref_vars, atol=2e-3, rtol=2e-3)

    # --- larger, non-divisible batch exercises the padding / tiling path ----
    B2 = 300
    z_big = jax.random.normal(k_z2, (B2, z_dim), dtype=jnp.float32)
    means2, vars2 = decoder_forward_prepared(z_big, params_f32, x_dim=x_dim,
                                             hidden_dim=hidden_dim)
    jax.block_until_ready((means2, vars2))
    ref_means2, ref_vars2 = _reference_forward(z_big, w1, b1, w2, b2, x_dim)
    assert means2.shape == (B2, x_dim) and vars2.shape == (B2, x_dim)
    assert jnp.allclose(means2, ref_means2, atol=2e-3, rtol=2e-3)
    assert jnp.allclose(vars2, ref_vars2, atol=2e-3, rtol=2e-3)

    # --- bf16 MXU inputs (fine on v5e/v6e/v7x), looser tolerance -------------
    params_bf16 = prepare_decoder_params(w1, b1, w2, b2, compute_dtype=jnp.bfloat16)
    means_bf, vars_bf = decoder_forward_prepared(z_big, params_bf16, x_dim=x_dim,
                                                 hidden_dim=hidden_dim)
    jax.block_until_ready((means_bf, vars_bf))
    assert jnp.allclose(means_bf, ref_means2, atol=2e-2, rtol=2e-2)
    assert jnp.allclose(vars_bf, ref_vars2, atol=2e-2, rtol=2e-2)

    # --- x_dim multiple of 128: split-output (no lane-mask) path -------------
    x_dim2, hidden2, B3 = 128, 64, 64
    z3 = jax.random.normal(k_z3, (B3, z_dim), dtype=jnp.float32)
    w3 = jax.random.normal(k_w3, (z_dim, hidden2), dtype=jnp.float32) * 0.1
    b3 = jax.random.normal(k_b3, (hidden2,), dtype=jnp.float32) * 0.1
    w4 = jax.random.normal(k_w4, (hidden2, 2 * x_dim2), dtype=jnp.float32) * 0.1
    b4 = jax.random.normal(k_b4, (2 * x_dim2,), dtype=jnp.float32) * 0.1
    params_split = prepare_decoder_params(w3, b3, w4, b4)
    means3, vars3 = decoder_forward_prepared(z3, params_split, x_dim=x_dim2,
                                             hidden_dim=hidden2)
    jax.block_until_ready((means3, vars3))
    ref_means3, ref_vars3 = _reference_forward(z3, w3, b3, w4, b4, x_dim2)
    assert means3.shape == (B3, x_dim2) and vars3.shape == (B3, x_dim2)
    assert jnp.allclose(means3, ref_means3, atol=2e-3, rtol=2e-3)
    assert jnp.allclose(vars3, ref_vars3, atol=2e-3, rtol=2e-3)

    print("KERNEL_OK")
</pallas_src>

<mosaic_0001>
module attributes {stable_mosaic.version = 11 : i64} {
  func.func @_decoder_kernel_fused(%arg0: i32, %arg1: memref<8x8xf32, #tpu.memory_space<vmem>>, %arg2: memref<8x128xf32, #tpu.memory_space<vmem>>, %arg3: memref<1x128xf32, #tpu.memory_space<vmem>>, %arg4: memref<128x128xf32, #tpu.memory_space<vmem>>, %arg5: memref<1x128xf32, #tpu.memory_space<vmem>>, %arg6: memref<8x128xf32, #tpu.memory_space<vmem>>) attributes {dimension_semantics = [#tpu.dimension_semantics<parallel>], iteration_bounds = array<i64: 1>, scalar_prefetch = 0 : i64, scratch_operands = 0 : i64, tpu.core_type = #tpu.core_type<tc>, window_params = [{transform_indices = @transform_0, window_bounds = array<i64: 8, 8>}, {pipeline_mode = #tpu.pipeline_mode<synchronous>, transform_indices = @transform_1, window_bounds = array<i64: 8, 128>}, {pipeline_mode = #tpu.pipeline_mode<synchronous>, transform_indices = @transform_2, window_bounds = array<i64: 1, 128>}, {pipeline_mode = #tpu.pipeline_mode<synchronous>, transform_indices = @transform_3, window_bounds = array<i64: 128, 128>}, {pipeline_mode = #tpu.pipeline_mode<synchronous>, transform_indices = @transform_4, window_bounds = array<i64: 1, 128>}, {transform_indices = @transform_5, window_bounds = array<i64: 8, 128>}]} {
    %c0 = arith.constant 0 : index
    %c0_0 = arith.constant 0 : index
    %0 = vector.load %arg1[%c0, %c0_0] : memref<8x8xf32, #tpu.memory_space<vmem>>, vector<8x8xf32>
    %c0_1 = arith.constant 0 : index
    %c0_2 = arith.constant 0 : index
    %1 = vector.load %arg2[%c0_1, %c0_2] : memref<8x128xf32, #tpu.memory_space<vmem>>, vector<8x128xf32>
    %cst = arith.constant dense<0.000000e+00> : vector<8x128xf32>
    %2 = tpu.matmul %0, %1, %cst {dimension_numbers = #tpu.dot_dimension_numbers<[1], [0], [0], [1], [0, 0, 1, 1], [], []>} : vector<8x8xf32>, vector<8x128xf32>, vector<8x128xf32> -> vector<8x128xf32>
    %c0_3 = arith.constant 0 : index
    %c0_4 = arith.constant 0 : index
    %3 = vector.load %arg3[%c0_3, %c0_4] : memref<1x128xf32, #tpu.memory_space<vmem>>, vector<1x128xf32>
    %4 = vector.broadcast %3 : vector<1x128xf32> to vector<8x128xf32>
    %5 = arith.addf %2, %4 : vector<8x128xf32>
    %cst_5 = arith.constant 0.000000e+00 : f32
    %6 = vector.broadcast %cst_5 : f32 to vector<8x128xf32>
    %7 = arith.maximumf %5, %6 : vector<8x128xf32>
    %c0_6 = arith.constant 0 : index
    %c0_7 = arith.constant 0 : index
    %8 = vector.load %arg4[%c0_6, %c0_7] : memref<128x128xf32, #tpu.memory_space<vmem>>, vector<128x128xf32>
    %cst_8 = arith.constant dense<0.000000e+00> : vector<8x128xf32>
    %9 = tpu.matmul %7, %8, %cst_8 {dimension_numbers = #tpu.dot_dimension_numbers<[1], [0], [0], [1], [0, 0, 1, 1], [], []>} : vector<8x128xf32>, vector<128x128xf32>, vector<8x128xf32> -> vector<8x128xf32>
    %c0_9 = arith.constant 0 : index
    %c0_10 = arith.constant 0 : index
    %10 = vector.load %arg5[%c0_9, %c0_10] : memref<1x128xf32, #tpu.memory_space<vmem>>, vector<1x128xf32>
    %11 = vector.broadcast %10 : vector<1x128xf32> to vector<8x128xf32>
    %12 = arith.addf %9, %11 : vector<8x128xf32>
    %13 = math.absf %12 : vector<8x128xf32>
    %cst_11 = arith.constant 0.000000e+00 : f32
    %14 = vector.broadcast %cst_11 : f32 to vector<8x128xf32>
    %15 = arith.subf %14, %13 : vector<8x128xf32>
    %16 = math.exp %15 : vector<8x128xf32>
    %cst_12 = arith.constant 1.000000e+00 : f32
    %17 = vector.broadcast %cst_12 : f32 to vector<8x128xf32>
    %18 = arith.addf %17, %16 : vector<8x128xf32>
    %19 = tpu.reciprocal %18 {approx = true} : vector<8x128xf32> -> vector<8x128xf32>
    %cst_13 = arith.constant 0.000000e+00 : f32
    %20 = vector.broadcast %cst_13 : f32 to vector<8x128xf32>
    %21 = arith.cmpf oge, %12, %20 : vector<8x128xf32>
    %22 = arith.mulf %16, %19 : vector<8x128xf32>
    %23 = arith.select %21, %19, %22 : vector<8x128xi1>, vector<8x128xf32>
    %cst_14 = arith.constant 0.000000e+00 : f32
    %24 = vector.broadcast %cst_14 : f32 to vector<8x128xf32>
    %25 = arith.maximumf %12, %24 : vector<8x128xf32>
    %cst_15 = arith.constant 1.000000e+00 : f32
    %26 = vector.broadcast %cst_15 : f32 to vector<8x128xf32>
    %27 = arith.addf %26, %16 : vector<8x128xf32>
    %28 = math.log %27 : vector<8x128xf32>
    %29 = arith.addf %25, %28 : vector<8x128xf32>
    %30 = tpu.iota {dimensions = array<i32: 1>} : vector<8x128xi32>
    %c16_i32 = arith.constant 16 : i32
    %31 = vector.broadcast %c16_i32 : i32 to vector<8x128xi32>
    %32 = arith.cmpi slt, %30, %31 : vector<8x128xi32>
    %33 = arith.select %32, %23, %29 : vector<8x128xi1>, vector<8x128xf32>
    %c0_16 = arith.constant 0 : index
    %c0_17 = arith.constant 0 : index
    %34 = vector.load %arg6[%c0_16, %c0_17] : memref<8x128xf32, #tpu.memory_space<vmem>>, vector<8x128xf32>
    tpu.vector_store %arg6[%c0_16, %c0_17], %33 {strides = array<i32>} : memref<8x128xf32, #tpu.memory_space<vmem>>, vector<8x128xf32>,
    return
  }
  func.func @transform_0(%arg0: i32) -> (i32, i32) {
    %c0_i32 = arith.constant 0 : i32
    %c0_i32_0 = arith.constant 0 : i32
    return %arg0, %c0_i32 : i32, i32
  }
  func.func @transform_1(%arg0: i32) -> (i32, i32) {
    %c0_i32 = arith.constant 0 : i32
    %c0_i32_0 = arith.constant 0 : i32
    %c0_i32_1 = arith.constant 0 : i32
    return %c0_i32, %c0_i32_0 : i32, i32
  }
  func.func @transform_2(%arg0: i32) -> (i32, i32) {
    %c0_i32 = arith.constant 0 : i32
    %c0_i32_0 = arith.constant 0 : i32
    %c0_i32_1 = arith.constant 0 : i32
    return %c0_i32, %c0_i32_0 : i32, i32
  }
  func.func @transform_3(%arg0: i32) -> (i32, i32) {
    %c0_i32 = arith.constant 0 : i32
    %c0_i32_0 = arith.constant 0 : i32
    %c0_i32_1 = arith.constant 0 : i32
    return %c0_i32, %c0_i32_0 : i32, i32
  }
  func.func @transform_4(%arg0: i32) -> (i32, i32) {
    %c0_i32 = arith.constant 0 : i32
    %c0_i32_0 = arith.constant 0 : i32
    %c0_i32_1 = arith.constant 0 : i32
    return %c0_i32, %c0_i32_0 : i32, i32
  }
  func.func @transform_5(%arg0: i32) -> (i32, i32) {
    %c0_i32 = arith.constant 0 : i32
    %c0_i32_0 = arith.constant 0 : i32
    return %arg0, %c0_i32 : i32, i32
  }
}

</mosaic_0001>

<llo_original>
// kernel: decoder_forward_prepared.1
$region0: #{decoder_forward_prepared.1}
  #allocation0 [shape = 'u32[]', space=smem, size = 0x4, offset = 0x4, fixed_abs, tag = 'smem constant byte address 0x4 - core index']
  #allocation1 [shape = 'u32[144,128]{1,0:T(1,128)}', space=vmem, size = 0x12000, scoped, tag = 'internal scratch']
  %s0 = inlined_call_operand.hbm [shape: f32[8,8], index: 0, kind: input, shape index: {}]
  %s1 = inlined_call_operand.hbm [shape: f32[8,128], index: 1, kind: input, shape index: {}]
  %s2 = inlined_call_operand.vmem [shape: f32[1,128], index: 2, kind: input, shape index: {}]
  %s3 = inlined_call_operand.hbm [shape: f32[128,128], index: 3, kind: input, shape index: {}]
  %s4 = inlined_call_operand.vmem [shape: f32[1,128], index: 4, kind: input, shape index: {}]
  %s5 = inlined_call_operand.vmem [shape: f32[8,128], index: 5, kind: output, shape index: {}]
  %s6 = sld [smem:[#allocation0]]
  $region42: #{decoder_forward_prepared.1} parent=0
    _
  %s8 = ssub.s32 1, %s6
  %s9 = scalar_select 0, %s8, %s6
  $region1: #{decoder_forward_prepared.1} parent=0
    #allocation2 [shape = 'u8[4096]{0}', space=vmem, size = 0x1000, scoped, tag = 'input window, operand 0, single buffered']
    #allocation3 [shape = 's32[1]{0}', space=sflag, size = 0x4, scoped, tag = 'scoped memory for decoder_forward_prepared.1']
    #allocation4 [shape = 'u8[4096]{0}', space=vmem, size = 0x1000, scoped, tag = 'input window, operand 1, single buffered']
    #allocation5 [shape = 's32[1]{0}', space=sflag, size = 0x4, scoped, tag = 'scoped memory for decoder_forward_prepared.1']
    #allocation6 [shape = 'u8[65536]{0}', space=vmem, size = 0x10000, scoped, tag = 'input window, operand 3, single buffered']
    %10 = vsyncpa [#allocation3], 0
    %11 = vsyncpa [#allocation5], 0
    // Predicated region
    $region2: #{decoder_forward_prepared.1} parent=1 // pred_check
      _
    $region3: #{decoder_forward_prepared.1} parent=1 // pred_check_branch
      %13 = sbr.rel (0) target = $region5
    $region4: #{decoder_forward_prepared.1} parent=1 // pred_region
      %s15 = ssub.s32 128, 128
      %16 = vsyncadd [#allocation3], %s15
      %s18 = sshll.u32 [#allocation2], 4
      %s19 = int_to_ptr.vmem [resolvable:$true] %s18
      %21 = dma.hbm_to_vmem [thread:$0]  %s0, 128, %s19, [#allocation3]
    $region5: #{decoder_forward_prepared.1} parent=1 // pred_fallthru
      _
    // Predicated region
    $region6: #{decoder_forward_prepared.1} parent=1 // pred_check
      _
    $region7: #{decoder_forward_prepared.1} parent=1 // pred_check_branch
      %23 = sbr.rel (0) target = $region9
    $region8: #{decoder_forward_prepared.1} parent=1 // pred_region
      %s25 = ssub.s32 128, 128
      %26 = vsyncadd [#allocation5], %s25
      %s28 = sshll.u32 [#allocation4], 4
      %s29 = int_to_ptr.vmem [resolvable:$true] %s28
      %31 = dma.hbm_to_vmem [thread:$0]  %s1, 128, %s29, [#allocation5]
    $region9: #{decoder_forward_prepared.1} parent=1 // pred_fallthru
      _
    // Predicated region
    $region10: #{decoder_forward_prepared.1} parent=1 // pred_check
      _
    $region11: #{decoder_forward_prepared.1} parent=1 // pred_check_branch
      %33 = sbr.rel (0) target = $region13
    $region12: #{decoder_forward_prepared.1} parent=1 // pred_region
      _
    $region13: #{decoder_forward_prepared.1} parent=1 // pred_fallthru
      _
    // Predicated region
    $region14: #{decoder_forward_prepared.1} parent=1 // pred_check
      _
    $region15: #{decoder_forward_prepared.1} parent=1 // pred_check_branch
      %35 = sbr.rel (0) target = $region17
    $region16: #{decoder_forward_prepared.1} parent=1 // pred_region
      %s37 = ssub.s32 2048, 2048
      %38 = vsyncadd [#allocation5], %s37
      %s39 = sshll.u32 [#allocation6], 4
      %s40 = int_to_ptr.vmem [resolvable:$true] %s39
      %45 = dma.hbm_to_vmem [thread:$0]  %s3, 2048, %s40, [#allocation5], 128, 128, 8
    $region17: #{decoder_forward_prepared.1} parent=1 // pred_fallthru
      _
    // Predicated region
    $region18: #{decoder_forward_prepared.1} parent=1 // pred_check
      _
    $region19: #{decoder_forward_prepared.1} parent=1 // pred_check_branch
      %47 = sbr.rel (0) target = $region21
    $region20: #{decoder_forward_prepared.1} parent=1 // pred_region
      _
    $region21: #{decoder_forward_prepared.1} parent=1 // pred_fallthru
      _
    // Predicated region
    $region22: #{decoder_forward_prepared.1} parent=1 // pred_check
      _
    $region23: #{decoder_forward_prepared.1} parent=1 // pred_check_branch
      %49 = sbr.rel (0) target = $region25
    $region24: #{decoder_forward_prepared.1} parent=1 // pred_region
      %50 = dma.done [#allocation3], 128
    $region25: #{decoder_forward_prepared.1} parent=1 // pred_fallthru
      _
    // Predicated region
    $region26: #{decoder_forward_prepared.1} parent=1 // pred_check
      _
    $region27: #{decoder_forward_prepared.1} parent=1 // pred_check_branch
      %52 = sbr.rel (0) target = $region29
    $region28: #{decoder_forward_prepared.1} parent=1 // pred_region
      %53 = dma.done [#allocation5], 128
    $region29: #{decoder_forward_prepared.1} parent=1 // pred_fallthru
      _
    // Predicated region
    $region30: #{decoder_forward_prepared.1} parent=1 // pred_check
      _
    $region31: #{decoder_forward_prepared.1} parent=1 // pred_check_branch
      %55 = sbr.rel (0) target = $region33
    $region32: #{decoder_forward_prepared.1} parent=1 // pred_region
      %56 = dma.done [#allocation5], 2048
    $region33: #{decoder_forward_prepared.1} parent=1 // pred_fallthru
      _
    %v57 = vld [vmem:[#allocation2] sm:$0xff]
    %v58 = vld [vmem:[#allocation4] sm:$0xff]
    %v59 = vld [vmem:[%s2] sm:$0x1]
    %v61 = vlaneseq
    %v62 = vshrl.u32 %v61, 7
    %v63 = vsub.s32 0, %v62
    %v64 = vrot.slane %v59, %v63
    %vm66 = vcmask 64512
    %v68 = vsel %vm66, %v57, 0
    %70 = vmatprep.subr.mxu0 0.0
    %71 = vmatpush1.msra.mxu0 0.0
    %72 = vmatprep.subr.mxu0 0.0
    %73 = vmatpush1.msra.mxu0 0.0
    %74 = vmatprep.subr.mxu0 0.0
    %75 = vmatpush1.msra.mxu0 0.0
    %76 = vmatprep.subr.mxu0 0.0
    %77 = vmatpush1.msra.mxu0 0.0
    %78 = vmatprep.subr.mxu0 0.0
    %79 = vmatpush1.msra.mxu0 0.0
    %80 = vmatprep.subr.mxu0 0.0
    %81 = vmatpush1.msra.mxu0 0.0
    %82 = vmatprep.subr.mxu0 0.0
    %83 = vmatpush1.msra.mxu0 0.0
    %84 = vmatprep.subr.mxu0 0.0
    %85 = vmatpush1.msra.mxu0 0.0
    %86 = vmatprep.subr.mxu0 0.0
    %87 = vmatpush1.msra.mxu0 0.0
    %88 = vmatprep.subr.mxu0 0.0
    %89 = vmatpush1.msra.mxu0 0.0
    %90 = vmatprep.subr.mxu0 0.0
    %91 = vmatpush1.msra.mxu0 0.0
    %92 = vmatprep.subr.mxu0 0.0
    %93 = vmatpush1.msra.mxu0 0.0
    %94 = vmatprep.subr.mxu0 0.0
    %95 = vmatpush1.msra.mxu0 0.0
    %96 = vmatprep.subr.mxu0 0.0
    %97 = vmatpush1.msra.mxu0 0.0
    %98 = vmatprep.subr.mxu0 0.0
    %99 = vmatpush1.msra.mxu0 0.0
    %100 = vmatprep.subr.mxu0 0.0
    %101 = vmatpush1.msra.mxu0 %v58
    %102 = vmatprep.subr.mxu0 0.0
    %103 = vmatpush2.msra.mxu0 0.0
    %104 = vmatprep.subr.mxu0 0.0
    %105 = vmatpush2.msra.mxu0 0.0
    %106 = vmatprep.subr.mxu0 0.0
    %107 = vmatpush2.msra.mxu0 0.0
    %108 = vmatprep.subr.mxu0 0.0
    %109 = vmatpush2.msra.mxu0 0.0
    %110 = vmatprep.subr.mxu0 0.0
    %111 = vmatpush2.msra.mxu0 0.0
    %112 = vmatprep.subr.mxu0 0.0
    %113 = vmatpush2.msra.mxu0 0.0
    %114 = vmatprep.subr.mxu0 0.0
    %115 = vmatpush2.msra.mxu0 0.0
    %116 = vmatprep.subr.mxu0 0.0
    %117 = vmatpush2.msra.mxu0 0.0
    %118 = vmatprep.subr.mxu0 0.0
    %119 = vmatpush2.msra.mxu0 0.0
    %120 = vmatprep.subr.mxu0 0.0
    %121 = vmatpush2.msra.mxu0 0.0
    %122 = vmatprep.subr.mxu0 0.0
    %123 = vmatpush2.msra.mxu0 0.0
    %124 = vmatprep.subr.mxu0 0.0
    %125 = vmatpush2.msra.mxu0 0.0
    %126 = vmatprep.subr.mxu0 0.0
    %127 = vmatpush2.msra.mxu0 0.0
    %128 = vmatprep.subr.mxu0 0.0
    %129 = vmatpush2.msra.mxu0 0.0
    %130 = vmatprep.subr.mxu0 0.0
    %131 = vmatpush2.msra.mxu0 0.0
    %132 = vmatprep.subr.mxu0 0.0
    %133 = vmatpush2.msra.mxu0 0.0
    %134 = vmatprep.mubr.f32.mxu0 0.0
    %135 = vmatmul.mubr.f32.gmra.mxu0 %v68
    %v136 = vpop.f32.mrf.mxu0
    %v137 = vadd.f32 %v64, %v136
    %v138 = vpop.f32.mrf.mxu0
    %139 = vdwg.mxu0
    %v140 = vmax.f32 %v137, 0.0
    %v141 = vld [vmem:[#allocation6] sm:$0xff]
    %v142 = vld [vmem:[#allocation6 + $0x8] sm:$0xff]
    %v143 = vld [vmem:[#allocation6 + $0x10] sm:$0xff]
    %v144 = vld [vmem:[#allocation6 + $0x18] sm:$0xff]
    %v145 = vld [vmem:[#allocation6 + $0x20] sm:$0xff]
    %v146 = vld [vmem:[#allocation6 + $0x28] sm:$0xff]
    %v147 = vld [vmem:[#allocation6 + $0x30] sm:$0xff]
    %v148 = vld [vmem:[#allocation6 + $0x38] sm:$0xff]
    %v149 = vld [vmem:[#allocation6 + $0x40] sm:$0xff]
    %v150 = vld [vmem:[#allocation6 + $0x48] sm:$0xff]
    %v151 = vld [vmem:[#allocation6 + $0x50] sm:$0xff]
    %v152 = vld [vmem:[#allocation6 + $0x58] sm:$0xff]
    %v153 = vld [vmem:[#allocation6 + $0x60] sm:$0xff]
    %v154 = vld [vmem:[#allocation6 + $0x68] sm:$0xff]
    %v155 = vld [vmem:[#allocation6 + $0x70] sm:$0xff]
    %v156 = vld [vmem:[#allocation6 + $0x78] sm:$0xff]
    %v157 = vld [vmem:[%s4] sm:$0x1]
    %v159 = vlaneseq
    %v160 = vshrl.u32 %v159, 7
    %v161 = vsub.s32 0, %v160
    %v162 = vrot.slane %v157, %v161
    %164 = vmatprep.subr.mxu0 0.0
    %165 = vmatpush1.msra.mxu0 %v156
    %166 = vmatprep.subr.mxu0 0.0
    %167 = vmatpush1.msra.mxu0 %v155
    %168 = vmatprep.subr.mxu0 0.0
    %169 = vmatpush1.msra.mxu0 %v154
    %170 = vmatprep.subr.mxu0 0.0
    %171 = vmatpush1.msra.mxu0 %v153
    %172 = vmatprep.subr.mxu0 0.0
    %173 = vmatpush1.msra.mxu0 %v152
    %174 = vmatprep.subr.mxu0 0.0
    %175 = vmatpush1.msra.mxu0 %v151
    %176 = vmatprep.subr.mxu0 0.0
    %177 = vmatpush1.msra.mxu0 %v150
    %178 = vmatprep.subr.mxu0 0.0
    %179 = vmatpush1.msra.mxu0 %v149
    %180 = vmatprep.subr.mxu0 0.0
    %181 = vmatpush1.msra.mxu0 %v148
    %182 = vmatprep.subr.mxu0 0.0
    %183 = vmatpush1.msra.mxu0 %v147
    %184 = vmatprep.subr.mxu0 0.0
    %185 = vmatpush1.msra.mxu0 %v146
    %186 = vmatprep.subr.mxu0 0.0
    %187 = vmatpush1.msra.mxu0 %v145
    %188 = vmatprep.subr.mxu0 0.0
    %189 = vmatpush1.msra.mxu0 %v144
    %190 = vmatprep.subr.mxu0 0.0
    %191 = vmatpush1.msra.mxu0 %v143
    %192 = vmatprep.subr.mxu0 0.0
    %193 = vmatpush1.msra.mxu0 %v142
    %194 = vmatprep.subr.mxu0 0.0
    %195 = vmatpush1.msra.mxu0 %v141
    %196 = vmatprep.subr.mxu0 0.0
    %197 = vmatpush2.msra.mxu0 0.0
    %198 = vmatprep.subr.mxu0 0.0
    %199 = vmatpush2.msra.mxu0 0.0
    %200 = vmatprep.subr.mxu0 0.0
    %201 = vmatpush2.msra.mxu0 0.0
    %202 = vmatprep.subr.mxu0 0.0
    %203 = vmatpush2.msra.mxu0 0.0
    %204 = vmatprep.subr.mxu0 0.0
    %205 = vmatpush2.msra.mxu0 0.0
    %206 = vmatprep.subr.mxu0 0.0
    %207 = vmatpush2.msra.mxu0 0.0
    %208 = vmatprep.subr.mxu0 0.0
    %209 = vmatpush2.msra.mxu0 0.0
    %210 = vmatprep.subr.mxu0 0.0
    %211 = vmatpush2.msra.mxu0 0.0
    %212 = vmatprep.subr.mxu0 0.0
    %213 = vmatpush2.msra.mxu0 0.0
    %214 = vmatprep.subr.mxu0 0.0
    %215 = vmatpush2.msra.mxu0 0.0
    %216 = vmatprep.subr.mxu0 0.0
    %217 = vmatpush2.msra.mxu0 0.0
    %218 = vmatprep.subr.mxu0 0.0
    %219 = vmatpush2.msra.mxu0 0.0
    %220 = vmatprep.subr.mxu0 0.0
    %221 = vmatpush2.msra.mxu0 0.0
    %222 = vmatprep.subr.mxu0 0.0
    %223 = vmatpush2.msra.mxu0 0.0
    %224 = vmatprep.subr.mxu0 0.0
    %225 = vmatpush2.msra.mxu0 0.0
    %226 = vmatprep.subr.mxu0 0.0
    %227 = vmatpush2.msra.mxu0 0.0
    %228 = vmatprep.mubr.f32.mxu0 0.0
    %229 = vmatmul.mubr.f32.gmra.mxu0 %v140
    %v230 = vpop.f32.mrf.mxu0
    %v231 = vadd.f32 %v162, %v230
    %v232 = vpop.f32.mrf.mxu0
    %233 = vdwg.mxu0
    %v234 = vand.u32 2147483647, %v231
    %v235 = vsub.f32 0.0, %v234
    %v236 = vmul.f32 %v235, 1.442695
    %v237 = vpow.pop %v236
    %v238 = vadd.f32 %v237, 1.0
    %v239 = vrcp.pop %v238
    %vm240 = vcmp.ge.f32.partialorder %v231, 0.0
    %v241 = vmul.f32 %v237, %v239
    %v242 = vsel %vm240, %v239, %v241
    %v243 = vmax.f32 %v231, 0.0
    %v244 = vlog2.pop %v238
    %v245 = vmul.f32 %v244, 0.6931472
    %v246 = vadd.f32 %v243, %v245
    %v247 = vlaneseq
    %v248 = vand.u32 %v247, 127
    %vm249 = vcmp.lt.s32.totalorder %v248, 16
    %v250 = vsel %vm249, %v242, %v246
    %251 = vst [vmem:[%s5] sm:$0xff] %v250
    // Predicated region
    $region34: #{decoder_forward_prepared.1} parent=1 // pred_check
      _
    $region35: #{decoder_forward_prepared.1} parent=1 // pred_check_branch
      %253 = sbr.rel (0) target = $region37
    $region36: #{decoder_forward_prepared.1} parent=1 // pred_region
      _
    $region37: #{decoder_forward_prepared.1} parent=1 // pred_fallthru
      _
    // Predicated region
    $region38: #{decoder_forward_prepared.1} parent=1 // pred_check
      _
    $region39: #{decoder_forward_prepared.1} parent=1 // pred_check_branch
      %255 = sbr.rel (0) target = $region41
    $region40: #{decoder_forward_prepared.1} parent=1 // pred_region
      _
    $region41: #{decoder_forward_prepared.1} parent=1 // pred_fallthru
      _
    %256 = vsyncpa [#allocation3], 1
    %257 = vsyncpa [#allocation5], 1

</llo_original>
